<compile_context>
chip_gen: v7x
topology: tpu7x:2x2x1
jax: 0.10.0
libtpu: 0.0.40
codegen_flags: <defaults>
</compile_context>

<pallas_src>
import jax
import jax.numpy as jnp
from jax.experimental import pallas as pl
from jax.experimental.pallas import tpu as pltpu

D_IN = 3      # features after torch.cat((x, y, e), axis=1)
H = 20        # hidden width
D_OUT = 2     # output width
PAD = 128     # lane-aligned padding for VMEM-resident intermediates
TILE_N = 1024  # batch rows per grid step (multiple of 8)


def mlp_kernel(x_ref, y_ref, e_ref, sp_ref, w_ref, o_ref):
    sp = sp_ref[...]  # (8, 128): rows 0..2 = W1 (in=3), rows 3..7 = b1..b5

    # Layer 1 (in=3): three broadcasted FMAs on the VPU (avoids a K=3 matmul).
    h = jnp.tanh(x_ref[...] * sp[0:1, :]
                 + y_ref[...] * sp[1:2, :]
                 + e_ref[...] * sp[2:3, :]
                 + sp[3:4, :])

    # Layers 2..4: (tile, 128) @ (128, 128) on the MXU, tanh on the EUP.
    h = jnp.tanh(jnp.dot(h, w_ref[0], preferred_element_type=jnp.float32) + sp[4:5, :])
    h = jnp.tanh(jnp.dot(h, w_ref[1], preferred_element_type=jnp.float32) + sp[5:6, :])
    h = jnp.tanh(jnp.dot(h, w_ref[2], preferred_element_type=jnp.float32) + sp[6:7, :])

    # Output layer; store only the 2 real output lanes (narrow HBM writeback).
    out = jnp.dot(h, w_ref[3], preferred_element_type=jnp.float32) + sp[7:8, :]
    o_ref[...] = out[:, :D_OUT]


def _round_up(v, m):
    return ((v + m - 1) // m) * m


def init_params(key):
    """Deterministic init mirroring nn.Linear default (U[-1/sqrt(in), 1/sqrt(in)]).

    Weights stored as (in, out) = W.T so the forward pass is x @ W + b.
    """
    dims = [(D_IN, H), (H, H), (H, H), (H, H), (H, D_OUT)]
    params = []
    for (fan_in, fan_out) in dims:
        key, kw, kb = jax.random.split(key, 3)
        bound = 1.0 / jnp.sqrt(jnp.float32(fan_in))
        w = jax.random.uniform(kw, (fan_in, fan_out), jnp.float32, -bound, bound)
        b = jax.random.uniform(kb, (1, fan_out), jnp.float32, -bound, bound)
        params.append((w, b))
    return params


def pack_params(params):
    """Pack 5 (W, b) pairs into two kernel operands (done once, off the hot path).

    sp:     (8, 128)      rows 0..2 = W1 rows (padded), rows 3..7 = b1..b5 (padded)
    wstack: (4, 128, 128) W2..W5, each zero-padded to 128x128
    """
    (w1, b1), (w2, b2), (w3, b3), (w4, b4), (w5, b5) = params
    sp = jnp.zeros((8, PAD), jnp.float32)
    sp = sp.at[0:D_IN, :w1.shape[1]].set(w1)
    for row, b in zip(range(3, 8), (b1, b2, b3, b4, b5)):
        b = jnp.reshape(b, (-1,))
        sp = sp.at[row, :b.shape[0]].set(b)

    wstack = jnp.zeros((4, PAD, PAD), jnp.float32)
    for idx, w in enumerate((w2, w3, w4, w5)):
        wstack = wstack.at[idx, :w.shape[0], :w.shape[1]].set(w)
    return sp, wstack


def mlp_forward(x, y, e, packed, tile_n=TILE_N):
    """x, y, e: (N, 1) float32.  Returns (N, 2) float32."""
    sp, wstack = packed
    n = x.shape[0]
    tile_n = min(tile_n, _round_up(n, 8))       # don't over-pad tiny batches
    n_pad = pl.cdiv(n, tile_n) * tile_n         # every grid step is a full tile

    def pad_rows(a):
        return jnp.pad(a, ((0, n_pad - n), (0, 0)))

    xp, yp, ep = pad_rows(x), pad_rows(y), pad_rows(e)

    col_spec = pl.BlockSpec((tile_n, 1), lambda i: (i, 0))
    out = pl.pallas_call(
        mlp_kernel,
        out_shape=jax.ShapeDtypeStruct((n_pad, D_OUT), jnp.float32),
        grid=(n_pad // tile_n,),
        in_specs=[
            col_spec,                                      # x column
            col_spec,                                      # y column
            col_spec,                                      # e column
            pl.BlockSpec((8, PAD), lambda i: (0, 0)),      # W1 rows + biases (resident)
            pl.BlockSpec((4, PAD, PAD), lambda i: (0, 0, 0)),  # W2..W5 (resident)
        ],
        out_specs=pl.BlockSpec((tile_n, D_OUT), lambda i: (i, 0)),
        compiler_params=pltpu.CompilerParams(dimension_semantics=("parallel",)),
    )(xp, yp, ep, sp, wstack)

    return out[:n, :]


def mlp_reference(x, y, e, params):
    a = jnp.concatenate((x, y, e), axis=1)
    for i, (w, b) in enumerate(params):
        a = a @ w + b
        if i < len(params) - 1:
            a = jnp.tanh(a)
    return a


if __name__ == "__main__":
    key = jax.random.PRNGKey(0)
    kp, kd = jax.random.split(key)

    params = init_params(kp)
    packed = pack_params(params)

    # Small primary case (N=8) plus a multi-tile case to exercise the grid.
    for n in (8, 2500):
        kd, kx, ky, ke = jax.random.split(kd, 4)
        x = jax.random.normal(kx, (n, 1), jnp.float32)
        y = jax.random.normal(ky, (n, 1), jnp.float32)
        e = jax.random.normal(ke, (n, 1), jnp.float32)

        out = mlp_forward(x, y, e, packed)
        jax.block_until_ready(out)

        ref = mlp_reference(x, y, e, params)
        assert out.shape == (n, D_OUT)
        assert jnp.allclose(out, ref, atol=2e-5, rtol=2e-5)

    print("KERNEL_OK")
</pallas_src>

<mosaic_0001>
module attributes {stable_mosaic.version = 11 : i64} {
  func.func @mlp_kernel(%arg0: i32, %arg1: memref<8x1xf32, #tpu.memory_space<vmem>>, %arg2: memref<8x1xf32, #tpu.memory_space<vmem>>, %arg3: memref<8x1xf32, #tpu.memory_space<vmem>>, %arg4: memref<8x128xf32, #tpu.memory_space<vmem>>, %arg5: memref<4x128x128xf32, #tpu.memory_space<vmem>>, %arg6: memref<8x2xf32, #tpu.memory_space<vmem>>) attributes {dimension_semantics = [#tpu.dimension_semantics<parallel>], iteration_bounds = array<i64: 1>, scalar_prefetch = 0 : i64, scratch_operands = 0 : i64, tpu.core_type = #tpu.core_type<tc>, window_params = [{transform_indices = @transform_0, window_bounds = array<i64: 8, 1>}, {transform_indices = @transform_1, window_bounds = array<i64: 8, 1>}, {transform_indices = @transform_2, window_bounds = array<i64: 8, 1>}, {pipeline_mode = #tpu.pipeline_mode<synchronous>, transform_indices = @transform_3, window_bounds = array<i64: 8, 128>}, {pipeline_mode = #tpu.pipeline_mode<synchronous>, transform_indices = @transform_4, window_bounds = array<i64: 4, 128, 128>}, {transform_indices = @transform_5, window_bounds = array<i64: 8, 2>}]} {
    %c0 = arith.constant 0 : index
    %c0_0 = arith.constant 0 : index
    %0 = vector.load %arg4[%c0, %c0_0] : memref<8x128xf32, #tpu.memory_space<vmem>>, vector<8x128xf32>
    %c0_1 = arith.constant 0 : index
    %c0_2 = arith.constant 0 : index
    %1 = vector.load %arg1[%c0_1, %c0_2] : memref<8x1xf32, #tpu.memory_space<vmem>>, vector<8x1xf32>
    %2 = vector.extract_strided_slice %0 {offsets = [0, 0], sizes = [1, 128], strides = [1, 1]} : vector<8x128xf32> to vector<1x128xf32>
    %3 = vector.broadcast %1 : vector<8x1xf32> to vector<8x128xf32>
    %4 = vector.broadcast %2 : vector<1x128xf32> to vector<8x128xf32>
    %5 = arith.mulf %3, %4 : vector<8x128xf32>
    %c0_3 = arith.constant 0 : index
    %c0_4 = arith.constant 0 : index
    %6 = vector.load %arg2[%c0_3, %c0_4] : memref<8x1xf32, #tpu.memory_space<vmem>>, vector<8x1xf32>
    %7 = vector.extract_strided_slice %0 {offsets = [1, 0], sizes = [1, 128], strides = [1, 1]} : vector<8x128xf32> to vector<1x128xf32>
    %8 = vector.broadcast %6 : vector<8x1xf32> to vector<8x128xf32>
    %9 = vector.broadcast %7 : vector<1x128xf32> to vector<8x128xf32>
    %10 = arith.mulf %8, %9 : vector<8x128xf32>
    %11 = arith.addf %5, %10 : vector<8x128xf32>
    %c0_5 = arith.constant 0 : index
    %c0_6 = arith.constant 0 : index
    %12 = vector.load %arg3[%c0_5, %c0_6] : memref<8x1xf32, #tpu.memory_space<vmem>>, vector<8x1xf32>
    %13 = vector.extract_strided_slice %0 {offsets = [2, 0], sizes = [1, 128], strides = [1, 1]} : vector<8x128xf32> to vector<1x128xf32>
    %14 = vector.broadcast %12 : vector<8x1xf32> to vector<8x128xf32>
    %15 = vector.broadcast %13 : vector<1x128xf32> to vector<8x128xf32>
    %16 = arith.mulf %14, %15 : vector<8x128xf32>
    %17 = arith.addf %11, %16 : vector<8x128xf32>
    %18 = vector.extract_strided_slice %0 {offsets = [3, 0], sizes = [1, 128], strides = [1, 1]} : vector<8x128xf32> to vector<1x128xf32>
    %19 = vector.broadcast %18 : vector<1x128xf32> to vector<8x128xf32>
    %20 = arith.addf %17, %19 : vector<8x128xf32>
    %21 = math.tanh %20 : vector<8x128xf32>
    %c0_7 = arith.constant 0 : index
    %c0_8 = arith.constant 0 : index
    %c0_9 = arith.constant 0 : index
    %22 = vector.load %arg5[%c0_7, %c0_8, %c0_9] : memref<4x128x128xf32, #tpu.memory_space<vmem>>, vector<1x128x128xf32>
    %23 = vector.shape_cast %22 : vector<1x128x128xf32> to vector<128x128xf32>
    %cst = arith.constant dense<0.000000e+00> : vector<8x128xf32>
    %24 = tpu.matmul %21, %23, %cst {dimension_numbers = #tpu.dot_dimension_numbers<[1], [0], [0], [1], [0, 0, 1, 1], [], []>} : vector<8x128xf32>, vector<128x128xf32>, vector<8x128xf32> -> vector<8x128xf32>
    %25 = vector.extract_strided_slice %0 {offsets = [4, 0], sizes = [1, 128], strides = [1, 1]} : vector<8x128xf32> to vector<1x128xf32>
    %26 = vector.broadcast %25 : vector<1x128xf32> to vector<8x128xf32>
    %27 = arith.addf %24, %26 : vector<8x128xf32>
    %28 = math.tanh %27 : vector<8x128xf32>
    %c1 = arith.constant 1 : index
    %c0_10 = arith.constant 0 : index
    %c0_11 = arith.constant 0 : index
    %29 = vector.load %arg5[%c1, %c0_10, %c0_11] : memref<4x128x128xf32, #tpu.memory_space<vmem>>, vector<1x128x128xf32>
    %30 = vector.shape_cast %29 : vector<1x128x128xf32> to vector<128x128xf32>
    %cst_12 = arith.constant dense<0.000000e+00> : vector<8x128xf32>
    %31 = tpu.matmul %28, %30, %cst_12 {dimension_numbers = #tpu.dot_dimension_numbers<[1], [0], [0], [1], [0, 0, 1, 1], [], []>} : vector<8x128xf32>, vector<128x128xf32>, vector<8x128xf32> -> vector<8x128xf32>
    %32 = vector.extract_strided_slice %0 {offsets = [5, 0], sizes = [1, 128], strides = [1, 1]} : vector<8x128xf32> to vector<1x128xf32>
    %33 = vector.broadcast %32 : vector<1x128xf32> to vector<8x128xf32>
    %34 = arith.addf %31, %33 : vector<8x128xf32>
    %35 = math.tanh %34 : vector<8x128xf32>
    %c2 = arith.constant 2 : index
    %c0_13 = arith.constant 0 : index
    %c0_14 = arith.constant 0 : index
    %36 = vector.load %arg5[%c2, %c0_13, %c0_14] : memref<4x128x128xf32, #tpu.memory_space<vmem>>, vector<1x128x128xf32>
    %37 = vector.shape_cast %36 : vector<1x128x128xf32> to vector<128x128xf32>
    %cst_15 = arith.constant dense<0.000000e+00> : vector<8x128xf32>
    %38 = tpu.matmul %35, %37, %cst_15 {dimension_numbers = #tpu.dot_dimension_numbers<[1], [0], [0], [1], [0, 0, 1, 1], [], []>} : vector<8x128xf32>, vector<128x128xf32>, vector<8x128xf32> -> vector<8x128xf32>
    %39 = vector.extract_strided_slice %0 {offsets = [6, 0], sizes = [1, 128], strides = [1, 1]} : vector<8x128xf32> to vector<1x128xf32>
    %40 = vector.broadcast %39 : vector<1x128xf32> to vector<8x128xf32>
    %41 = arith.addf %38, %40 : vector<8x128xf32>
    %42 = math.tanh %41 : vector<8x128xf32>
    %c3 = arith.constant 3 : index
    %c0_16 = arith.constant 0 : index
    %c0_17 = arith.constant 0 : index
    %43 = vector.load %arg5[%c3, %c0_16, %c0_17] : memref<4x128x128xf32, #tpu.memory_space<vmem>>, vector<1x128x128xf32>
    %44 = vector.shape_cast %43 : vector<1x128x128xf32> to vector<128x128xf32>
    %cst_18 = arith.constant dense<0.000000e+00> : vector<8x128xf32>
    %45 = tpu.matmul %42, %44, %cst_18 {dimension_numbers = #tpu.dot_dimension_numbers<[1], [0], [0], [1], [0, 0, 1, 1], [], []>} : vector<8x128xf32>, vector<128x128xf32>, vector<8x128xf32> -> vector<8x128xf32>
    %46 = vector.extract_strided_slice %0 {offsets = [7, 0], sizes = [1, 128], strides = [1, 1]} : vector<8x128xf32> to vector<1x128xf32>
    %47 = vector.broadcast %46 : vector<1x128xf32> to vector<8x128xf32>
    %48 = arith.addf %45, %47 : vector<8x128xf32>
    %49 = vector.extract_strided_slice %48 {offsets = [0, 0], sizes = [8, 2], strides = [1, 1]} : vector<8x128xf32> to vector<8x2xf32>
    %c0_19 = arith.constant 0 : index
    %c0_20 = arith.constant 0 : index
    %50 = vector.load %arg6[%c0_19, %c0_20] : memref<8x2xf32, #tpu.memory_space<vmem>>, vector<8x2xf32>
    tpu.vector_store %arg6[%c0_19, %c0_20], %49 {strides = array<i32>} : memref<8x2xf32, #tpu.memory_space<vmem>>, vector<8x2xf32>,
    return
  }
  func.func @transform_0(%arg0: i32) -> (i32, i32) {
    %c0_i32 = arith.constant 0 : i32
    %c0_i32_0 = arith.constant 0 : i32
    return %arg0, %c0_i32 : i32, i32
  }
  func.func @transform_1(%arg0: i32) -> (i32, i32) {
    %c0_i32 = arith.constant 0 : i32
    %c0_i32_0 = arith.constant 0 : i32
    return %arg0, %c0_i32 : i32, i32
  }
  func.func @transform_2(%arg0: i32) -> (i32, i32) {
    %c0_i32 = arith.constant 0 : i32
    %c0_i32_0 = arith.constant 0 : i32
    return %arg0, %c0_i32 : i32, i32
  }
  func.func @transform_3(%arg0: i32) -> (i32, i32) {
    %c0_i32 = arith.constant 0 : i32
    %c0_i32_0 = arith.constant 0 : i32
    %c0_i32_1 = arith.constant 0 : i32
    return %c0_i32, %c0_i32_0 : i32, i32
  }
  func.func @transform_4(%arg0: i32) -> (i32, i32, i32) {
    %c0_i32 = arith.constant 0 : i32
    %c0_i32_0 = arith.constant 0 : i32
    %c0_i32_1 = arith.constant 0 : i32
    %c0_i32_2 = arith.constant 0 : i32
    return %c0_i32, %c0_i32_0, %c0_i32_1 : i32, i32, i32
  }
  func.func @transform_5(%arg0: i32) -> (i32, i32) {
    %c0_i32 = arith.constant 0 : i32
    %c0_i32_0 = arith.constant 0 : i32
    return %arg0, %c0_i32 : i32, i32
  }
}

</mosaic_0001>

<llo_original>
// kernel: tpu_custom_call.1
$region0: #{tpu_custom_call.1}
  #allocation0 [shape = 'u32[]', space=smem, size = 0x4, offset = 0x4, fixed_abs, tag = 'smem constant byte address 0x4 - core index']
  #allocation1 [shape = 'u32[144,128]{1,0:T(1,128)}', space=vmem, size = 0x12000, scoped, tag = 'internal scratch']
  %s0 = inlined_call_operand.vmem [shape: f32[8,1], index: 0, kind: input, shape index: {}]
  %s1 = inlined_call_operand.vmem [shape: f32[8,1], index: 1, kind: input, shape index: {}]
  %s2 = inlined_call_operand.vmem [shape: f32[8,1], index: 2, kind: input, shape index: {}]
  %s3 = inlined_call_operand.vmem [shape: f32[8,128], index: 3, kind: input, shape index: {}]
  %s4 = inlined_call_operand.hbm [shape: f32[4,128,128], index: 4, kind: input, shape index: {}]
  %s5 = inlined_call_operand.vmem [shape: f32[8,2], index: 5, kind: output, shape index: {}]
  %s6 = sld [smem:[#allocation0]]
  $region34: #{tpu_custom_call.1} parent=0
    _
  %s8 = ssub.s32 1, %s6
  %s9 = scalar_select 0, %s8, %s6
  $region1: #{tpu_custom_call.1} parent=0
    #allocation2 [shape = 'u8[262144]{0}', space=vmem, size = 0x40000, scoped, tag = 'input window, operand 4, single buffered']
    #allocation3 [shape = 's32[1]{0}', space=sflag, size = 0x4, scoped, tag = 'scoped memory for tpu_custom_call.1']
    %10 = vsyncpa [#allocation3], 0
    // Predicated region
    $region2: #{tpu_custom_call.1} parent=1 // pred_check
      _
    $region3: #{tpu_custom_call.1} parent=1 // pred_check_branch
      %12 = sbr.rel (0) target = $region5
    $region4: #{tpu_custom_call.1} parent=1 // pred_region
      _
    $region5: #{tpu_custom_call.1} parent=1 // pred_fallthru
      _
    // Predicated region
    $region6: #{tpu_custom_call.1} parent=1 // pred_check
      _
    $region7: #{tpu_custom_call.1} parent=1 // pred_check_branch
      %14 = sbr.rel (0) target = $region9
    $region8: #{tpu_custom_call.1} parent=1 // pred_region
      _
    $region9: #{tpu_custom_call.1} parent=1 // pred_fallthru
      _
    // Predicated region
    $region10: #{tpu_custom_call.1} parent=1 // pred_check
      _
    $region11: #{tpu_custom_call.1} parent=1 // pred_check_branch
      %16 = sbr.rel (0) target = $region13
    $region12: #{tpu_custom_call.1} parent=1 // pred_region
      _
    $region13: #{tpu_custom_call.1} parent=1 // pred_fallthru
      _
    // Predicated region
    $region14: #{tpu_custom_call.1} parent=1 // pred_check
      _
    $region15: #{tpu_custom_call.1} parent=1 // pred_check_branch
      %18 = sbr.rel (0) target = $region17
    $region16: #{tpu_custom_call.1} parent=1 // pred_region
      _
    $region17: #{tpu_custom_call.1} parent=1 // pred_fallthru
      _
    // Predicated region
    $region18: #{tpu_custom_call.1} parent=1 // pred_check
      _
    $region19: #{tpu_custom_call.1} parent=1 // pred_check_branch
      %20 = sbr.rel (0) target = $region21
    $region20: #{tpu_custom_call.1} parent=1 // pred_region
      %s22 = ssub.s32 8192, 8192
      %23 = vsyncadd [#allocation3], %s22
      %s24 = sshll.u32 [#allocation2], 4
      %s25 = int_to_ptr.vmem [resolvable:$true] %s24
      %30 = dma.hbm_to_vmem [thread:$0]  %s4, 8192, %s25, [#allocation3], 128, 128, 8
    $region21: #{tpu_custom_call.1} parent=1 // pred_fallthru
      _
    // Predicated region
    $region22: #{tpu_custom_call.1} parent=1 // pred_check
      _
    $region23: #{tpu_custom_call.1} parent=1 // pred_check_branch
      %32 = sbr.rel (0) target = $region25
    $region24: #{tpu_custom_call.1} parent=1 // pred_region
      %33 = dma.done [#allocation3], 8192
    $region25: #{tpu_custom_call.1} parent=1 // pred_fallthru
      _
    %v34 = vld [vmem:[%s3] sm:$0xff]
    %v35 = vld [vmem:[%s0] sm:$0xff]
    %37 = vset.pattern.permute.xlu0 0
    %38 = vperm.xlu0 %37, %v35
    %v39 = vpop.permute.xlu0 %38
    %v41 = vlaneseq
    %v42 = vshrl.u32 %v41, 7
    %v43 = vsub.s32 0, %v42
    %v44 = vrot.slane %v34, %v43
    %v45 = vmul.f32 %v39, %v44
    %v46 = vld [vmem:[%s1] sm:$0xff]
    %48 = vset.pattern.permute.xlu0 0
    %49 = vperm.xlu0 %48, %v46
    %v50 = vpop.permute.xlu0 %49
    %v52 = vlaneseq
    %v53 = vshrl.u32 %v52, 7
    %v54 = vsub.s32 1, %v53
    %v55 = vrot.slane %v34, %v54
    %v56 = vmul.f32 %v50, %v55
    %v57 = vadd.f32 %v45, %v56
    %v58 = vld [vmem:[%s2] sm:$0xff]
    %60 = vset.pattern.permute.xlu0 0
    %61 = vperm.xlu0 %60, %v58
    %v62 = vpop.permute.xlu0 %61
    %v64 = vlaneseq
    %v65 = vshrl.u32 %v64, 7
    %v66 = vsub.s32 2, %v65
    %v67 = vrot.slane %v34, %v66
    %v68 = vmul.f32 %v62, %v67
    %v69 = vadd.f32 %v57, %v68
    %v70 = vlaneseq
    %v71 = vshrl.u32 %v70, 7
    %v72 = vsub.s32 3, %v71
    %v73 = vrot.slane %v34, %v72
    %v74 = vadd.f32 %v69, %v73
    %v75 = vtanh.pop %v74
    %v76 = vld [vmem:[#allocation2] sm:$0xff]
    %v77 = vld [vmem:[#allocation2 + $0x8] sm:$0xff]
    %v78 = vld [vmem:[#allocation2 + $0x10] sm:$0xff]
    %v79 = vld [vmem:[#allocation2 + $0x18] sm:$0xff]
    %v80 = vld [vmem:[#allocation2 + $0x20] sm:$0xff]
    %v81 = vld [vmem:[#allocation2 + $0x28] sm:$0xff]
    %v82 = vld [vmem:[#allocation2 + $0x30] sm:$0xff]
    %v83 = vld [vmem:[#allocation2 + $0x38] sm:$0xff]
    %v84 = vld [vmem:[#allocation2 + $0x40] sm:$0xff]
    %v85 = vld [vmem:[#allocation2 + $0x48] sm:$0xff]
    %v86 = vld [vmem:[#allocation2 + $0x50] sm:$0xff]
    %v87 = vld [vmem:[#allocation2 + $0x58] sm:$0xff]
    %v88 = vld [vmem:[#allocation2 + $0x60] sm:$0xff]
    %v89 = vld [vmem:[#allocation2 + $0x68] sm:$0xff]
    %v90 = vld [vmem:[#allocation2 + $0x70] sm:$0xff]
    %v91 = vld [vmem:[#allocation2 + $0x78] sm:$0xff]
    %v92 = vlaneseq
    %v93 = vshrl.u32 %v92, 7
    %v94 = vsub.s32 4, %v93
    %v95 = vrot.slane %v34, %v94
    %96 = vmatprep.subr.mxu0 0.0
    %97 = vmatpush1.msra.mxu0 %v76
    %98 = vmatprep.subr.mxu0 0.0
    %99 = vmatpush1.msra.mxu0 %v77
    %100 = vmatprep.subr.mxu0 0.0
    %101 = vmatpush1.msra.mxu0 %v78
    %102 = vmatprep.subr.mxu0 0.0
    %103 = vmatpush1.msra.mxu0 %v79
    %104 = vmatprep.subr.mxu0 0.0
    %105 = vmatpush1.msra.mxu0 %v80
    %106 = vmatprep.subr.mxu0 0.0
    %107 = vmatpush1.msra.mxu0 %v81
    %108 = vmatprep.subr.mxu0 0.0
    %109 = vmatpush1.msra.mxu0 %v82
    %110 = vmatprep.subr.mxu0 0.0
    %111 = vmatpush1.msra.mxu0 %v83
    %112 = vmatprep.subr.mxu0 0.0
    %113 = vmatpush1.msra.mxu0 %v84
    %114 = vmatprep.subr.mxu0 0.0
    %115 = vmatpush1.msra.mxu0 %v85
    %116 = vmatprep.subr.mxu0 0.0
    %117 = vmatpush1.msra.mxu0 %v86
    %118 = vmatprep.subr.mxu0 0.0
    %119 = vmatpush1.msra.mxu0 %v87
    %120 = vmatprep.subr.mxu0 0.0
    %121 = vmatpush1.msra.mxu0 %v88
    %122 = vmatprep.subr.mxu0 0.0
    %123 = vmatpush1.msra.mxu0 %v89
    %124 = vmatprep.subr.mxu0 0.0
    %125 = vmatpush1.msra.mxu0 %v90
    %126 = vmatprep.subr.mxu0 0.0
    %127 = vmatpush1.msra.mxu0 %v91
    %128 = vmatprep.subr.mxu0 0.0
    %129 = vmatpush1.msra.mxu0 0.0
    %130 = vmatprep.subr.mxu0 0.0
    %131 = vmatpush1.msra.mxu0 0.0
    %132 = vmatprep.subr.mxu0 0.0
    %133 = vmatpush1.msra.mxu0 0.0
    %134 = vmatprep.subr.mxu0 0.0
    %135 = vmatpush1.msra.mxu0 0.0
    %136 = vmatprep.subr.mxu0 0.0
    %137 = vmatpush1.msra.mxu0 0.0
    %138 = vmatprep.subr.mxu0 0.0
    %139 = vmatpush1.msra.mxu0 0.0
    %140 = vmatprep.subr.mxu0 0.0
    %141 = vmatpush1.msra.mxu0 0.0
    %142 = vmatprep.subr.mxu0 0.0
    %143 = vmatpush1.msra.mxu0 0.0
    %144 = vmatprep.subr.mxu0 0.0
    %145 = vmatpush1.msra.mxu0 0.0
    %146 = vmatprep.subr.mxu0 0.0
    %147 = vmatpush1.msra.mxu0 0.0
    %148 = vmatprep.subr.mxu0 0.0
    %149 = vmatpush1.msra.mxu0 0.0
    %150 = vmatprep.subr.mxu0 0.0
    %151 = vmatpush1.msra.mxu0 0.0
    %152 = vmatprep.subr.mxu0 0.0
    %153 = vmatpush1.msra.mxu0 0.0
    %154 = vmatprep.subr.mxu0 0.0
    %155 = vmatpush1.msra.mxu0 0.0
    %156 = vmatprep.subr.mxu0 0.0
    %157 = vmatpush1.msra.mxu0 0.0
    %158 = vmatprep.subr.mxu0 0.0
    %159 = vmatpush1.msra.mxu0 0.0
    %160 = vmatprep.mubr.f32.mxu0 0.0
    %161 = vmatmul.mubr.f32.gmra.mrb[0].mxu0 %v75
    %v162 = vpop.f32.mrb[0].mxu0
    %v163 = vadd.f32 %v95, %v162
    %v164 = vpop.f32.mrb[0].mxu0
    %165 = vdwg.mxu0
    %v166 = vtanh.pop %v163
    %s167 = scalar_lea.vmem [#allocation2], 128
    %v168 = vld [vmem:[%s167] sm:$0xff]
    %v169 = vld [vmem:[%s167 + $0x8] sm:$0xff]
    %v170 = vld [vmem:[%s167 + $0x10] sm:$0xff]
    %v171 = vld [vmem:[%s167 + $0x18] sm:$0xff]
    %v172 = vld [vmem:[%s167 + $0x20] sm:$0xff]
    %v173 = vld [vmem:[%s167 + $0x28] sm:$0xff]
    %v174 = vld [vmem:[%s167 + $0x30] sm:$0xff]
    %v175 = vld [vmem:[%s167 + $0x38] sm:$0xff]
    %v176 = vld [vmem:[%s167 + $0x40] sm:$0xff]
    %v177 = vld [vmem:[%s167 + $0x48] sm:$0xff]
    %v178 = vld [vmem:[%s167 + $0x50] sm:$0xff]
    %v179 = vld [vmem:[%s167 + $0x58] sm:$0xff]
    %v180 = vld [vmem:[%s167 + $0x60] sm:$0xff]
    %v181 = vld [vmem:[%s167 + $0x68] sm:$0xff]
    %v182 = vld [vmem:[%s167 + $0x70] sm:$0xff]
    %v183 = vld [vmem:[%s167 + $0x78] sm:$0xff]
    %v184 = vlaneseq
    %v185 = vshrl.u32 %v184, 7
    %v186 = vsub.s32 5, %v185
    %v187 = vrot.slane %v34, %v186
    %188 = vmatprep.subr.mxu0 0.0
    %189 = vmatpush1.msra.mxu0 %v168
    %190 = vmatprep.subr.mxu0 0.0
    %191 = vmatpush1.msra.mxu0 %v169
    %192 = vmatprep.subr.mxu0 0.0
    %193 = vmatpush1.msra.mxu0 %v170
    %194 = vmatprep.subr.mxu0 0.0
    %195 = vmatpush1.msra.mxu0 %v171
    %196 = vmatprep.subr.mxu0 0.0
    %197 = vmatpush1.msra.mxu0 %v172
    %198 = vmatprep.subr.mxu0 0.0
    %199 = vmatpush1.msra.mxu0 %v173
    %200 = vmatprep.subr.mxu0 0.0
    %201 = vmatpush1.msra.mxu0 %v174
    %202 = vmatprep.subr.mxu0 0.0
    %203 = vmatpush1.msra.mxu0 %v175
    %204 = vmatprep.subr.mxu0 0.0
    %205 = vmatpush1.msra.mxu0 %v176
    %206 = vmatprep.subr.mxu0 0.0
    %207 = vmatpush1.msra.mxu0 %v177
    %208 = vmatprep.subr.mxu0 0.0
    %209 = vmatpush1.msra.mxu0 %v178
    %210 = vmatprep.subr.mxu0 0.0
    %211 = vmatpush1.msra.mxu0 %v179
    %212 = vmatprep.subr.mxu0 0.0
    %213 = vmatpush1.msra.mxu0 %v180
    %214 = vmatprep.subr.mxu0 0.0
    %215 = vmatpush1.msra.mxu0 %v181
    %216 = vmatprep.subr.mxu0 0.0
    %217 = vmatpush1.msra.mxu0 %v182
    %218 = vmatprep.subr.mxu0 0.0
    %219 = vmatpush1.msra.mxu0 %v183
    %220 = vmatprep.subr.mxu0 0.0
    %221 = vmatpush1.msra.mxu0 0.0
    %222 = vmatprep.subr.mxu0 0.0
    %223 = vmatpush1.msra.mxu0 0.0
    %224 = vmatprep.subr.mxu0 0.0
    %225 = vmatpush1.msra.mxu0 0.0
    %226 = vmatprep.subr.mxu0 0.0
    %227 = vmatpush1.msra.mxu0 0.0
    %228 = vmatprep.subr.mxu0 0.0
    %229 = vmatpush1.msra.mxu0 0.0
    %230 = vmatprep.subr.mxu0 0.0
    %231 = vmatpush1.msra.mxu0 0.0
    %232 = vmatprep.subr.mxu0 0.0
    %233 = vmatpush1.msra.mxu0 0.0
    %234 = vmatprep.subr.mxu0 0.0
    %235 = vmatpush1.msra.mxu0 0.0
    %236 = vmatprep.subr.mxu0 0.0
    %237 = vmatpush1.msra.mxu0 0.0
    %238 = vmatprep.subr.mxu0 0.0
    %239 = vmatpush1.msra.mxu0 0.0
    %240 = vmatprep.subr.mxu0 0.0
    %241 = vmatpush1.msra.mxu0 0.0
    %242 = vmatprep.subr.mxu0 0.0
    %243 = vmatpush1.msra.mxu0 0.0
    %244 = vmatprep.subr.mxu0 0.0
    %245 = vmatpush1.msra.mxu0 0.0
    %246 = vmatprep.subr.mxu0 0.0
    %247 = vmatpush1.msra.mxu0 0.0
    %248 = vmatprep.subr.mxu0 0.0
    %249 = vmatpush1.msra.mxu0 0.0
    %250 = vmatprep.subr.mxu0 0.0
    %251 = vmatpush1.msra.mxu0 0.0
    %252 = vmatprep.mubr.f32.mxu0 0.0
    %253 = vmatmul.mubr.f32.gmra.mrb[0].mxu0 %v166
    %v254 = vpop.f32.mrb[0].mxu0
    %v255 = vadd.f32 %v187, %v254
    %v256 = vpop.f32.mrb[0].mxu0
    %257 = vdwg.mxu0
    %v258 = vtanh.pop %v255
    %s259 = scalar_lea.vmem [#allocation2], 256
    %v260 = vld [vmem:[%s259] sm:$0xff]
    %v261 = vld [vmem:[%s259 + $0x8] sm:$0xff]
    %v262 = vld [vmem:[%s259 + $0x10] sm:$0xff]
    %v263 = vld [vmem:[%s259 + $0x18] sm:$0xff]
    %v264 = vld [vmem:[%s259 + $0x20] sm:$0xff]
    %v265 = vld [vmem:[%s259 + $0x28] sm:$0xff]
    %v266 = vld [vmem:[%s259 + $0x30] sm:$0xff]
    %v267 = vld [vmem:[%s259 + $0x38] sm:$0xff]
    %v268 = vld [vmem:[%s259 + $0x40] sm:$0xff]
    %v269 = vld [vmem:[%s259 + $0x48] sm:$0xff]
    %v270 = vld [vmem:[%s259 + $0x50] sm:$0xff]
    %v271 = vld [vmem:[%s259 + $0x58] sm:$0xff]
    %v272 = vld [vmem:[%s259 + $0x60] sm:$0xff]
    %v273 = vld [vmem:[%s259 + $0x68] sm:$0xff]
    %v274 = vld [vmem:[%s259 + $0x70] sm:$0xff]
    %v275 = vld [vmem:[%s259 + $0x78] sm:$0xff]
    %v276 = vlaneseq
    %v277 = vshrl.u32 %v276, 7
    %v278 = vsub.s32 6, %v277
    %v279 = vrot.slane %v34, %v278
    %280 = vmatprep.subr.mxu0 0.0
    %281 = vmatpush1.msra.mxu0 %v260
    %282 = vmatprep.subr.mxu0 0.0
    %283 = vmatpush1.msra.mxu0 %v261
    %284 = vmatprep.subr.mxu0 0.0
    %285 = vmatpush1.msra.mxu0 %v262
    %286 = vmatprep.subr.mxu0 0.0
    %287 = vmatpush1.msra.mxu0 %v263
    %288 = vmatprep.subr.mxu0 0.0
    %289 = vmatpush1.msra.mxu0 %v264
    %290 = vmatprep.subr.mxu0 0.0
    %291 = vmatpush1.msra.mxu0 %v265
    %292 = vmatprep.subr.mxu0 0.0
    %293 = vmatpush1.msra.mxu0 %v266
    %294 = vmatprep.subr.mxu0 0.0
    %295 = vmatpush1.msra.mxu0 %v267
    %296 = vmatprep.subr.mxu0 0.0
    %297 = vmatpush1.msra.mxu0 %v268
    %298 = vmatprep.subr.mxu0 0.0
    %299 = vmatpush1.msra.mxu0 %v269
    %300 = vmatprep.subr.mxu0 0.0
    %301 = vmatpush1.msra.mxu0 %v270
    %302 = vmatprep.subr.mxu0 0.0
    %303 = vmatpush1.msra.mxu0 %v271
    %304 = vmatprep.subr.mxu0 0.0
    %305 = vmatpush1.msra.mxu0 %v272
    %306 = vmatprep.subr.mxu0 0.0
    %307 = vmatpush1.msra.mxu0 %v273
    %308 = vmatprep.subr.mxu0 0.0
    %309 = vmatpush1.msra.mxu0 %v274
    %310 = vmatprep.subr.mxu0 0.0
    %311 = vmatpush1.msra.mxu0 %v275
    %312 = vmatprep.subr.mxu0 0.0
    %313 = vmatpush1.msra.mxu0 0.0
    %314 = vmatprep.subr.mxu0 0.0
    %315 = vmatpush1.msra.mxu0 0.0
    %316 = vmatprep.subr.mxu0 0.0
    %317 = vmatpush1.msra.mxu0 0.0
    %318 = vmatprep.subr.mxu0 0.0
    %319 = vmatpush1.msra.mxu0 0.0
    %320 = vmatprep.subr.mxu0 0.0
    %321 = vmatpush1.msra.mxu0 0.0
    %322 = vmatprep.subr.mxu0 0.0
    %323 = vmatpush1.msra.mxu0 0.0
    %324 = vmatprep.subr.mxu0 0.0
    %325 = vmatpush1.msra.mxu0 0.0
    %326 = vmatprep.subr.mxu0 0.0
    %327 = vmatpush1.msra.mxu0 0.0
    %328 = vmatprep.subr.mxu0 0.0
    %329 = vmatpush1.msra.mxu0 0.0
    %330 = vmatprep.subr.mxu0 0.0
    %331 = vmatpush1.msra.mxu0 0.0
    %332 = vmatprep.subr.mxu0 0.0
    %333 = vmatpush1.msra.mxu0 0.0
    %334 = vmatprep.subr.mxu0 0.0
    %335 = vmatpush1.msra.mxu0 0.0
    %336 = vmatprep.subr.mxu0 0.0
    %337 = vmatpush1.msra.mxu0 0.0
    %338 = vmatprep.subr.mxu0 0.0
    %339 = vmatpush1.msra.mxu0 0.0
    %340 = vmatprep.subr.mxu0 0.0
    %341 = vmatpush1.msra.mxu0 0.0
    %342 = vmatprep.subr.mxu0 0.0
    %343 = vmatpush1.msra.mxu0 0.0
    %344 = vmatprep.mubr.f32.mxu0 0.0
    %345 = vmatmul.mubr.f32.gmra.mrb[0].mxu0 %v258
    %v346 = vpop.f32.mrb[0].mxu0
    %v347 = vadd.f32 %v279, %v346
    %v348 = vpop.f32.mrb[0].mxu0
    %349 = vdwg.mxu0
    %v350 = vtanh.pop %v347
    %s351 = scalar_lea.vmem [#allocation2], 384
    %v352 = vld [vmem:[%s351] sm:$0xff]
    %v353 = vld [vmem:[%s351 + $0x8] sm:$0xff]
    %v354 = vld [vmem:[%s351 + $0x10] sm:$0xff]
    %v355 = vld [vmem:[%s351 + $0x18] sm:$0xff]
    %v356 = vld [vmem:[%s351 + $0x20] sm:$0xff]
    %v357 = vld [vmem:[%s351 + $0x28] sm:$0xff]
    %v358 = vld [vmem:[%s351 + $0x30] sm:$0xff]
    %v359 = vld [vmem:[%s351 + $0x38] sm:$0xff]
    %v360 = vld [vmem:[%s351 + $0x40] sm:$0xff]
    %v361 = vld [vmem:[%s351 + $0x48] sm:$0xff]
    %v362 = vld [vmem:[%s351 + $0x50] sm:$0xff]
    %v363 = vld [vmem:[%s351 + $0x58] sm:$0xff]
    %v364 = vld [vmem:[%s351 + $0x60] sm:$0xff]
    %v365 = vld [vmem:[%s351 + $0x68] sm:$0xff]
    %v366 = vld [vmem:[%s351 + $0x70] sm:$0xff]
    %v367 = vld [vmem:[%s351 + $0x78] sm:$0xff]
    %v368 = vlaneseq
    %v369 = vshrl.u32 %v368, 7
    %v370 = vsub.s32 7, %v369
    %v371 = vrot.slane %v34, %v370
    %372 = vmatprep.subr.mxu0 0.0
    %373 = vmatpush1.msra.mxu0 %v352
    %374 = vmatprep.subr.mxu0 0.0
    %375 = vmatpush1.msra.mxu0 %v353
    %376 = vmatprep.subr.mxu0 0.0
    %377 = vmatpush1.msra.mxu0 %v354
    %378 = vmatprep.subr.mxu0 0.0
    %379 = vmatpush1.msra.mxu0 %v355
    %380 = vmatprep.subr.mxu0 0.0
    %381 = vmatpush1.msra.mxu0 %v356
    %382 = vmatprep.subr.mxu0 0.0
    %383 = vmatpush1.msra.mxu0 %v357
    %384 = vmatprep.subr.mxu0 0.0
    %385 = vmatpush1.msra.mxu0 %v358
    %386 = vmatprep.subr.mxu0 0.0
    %387 = vmatpush1.msra.mxu0 %v359
    %388 = vmatprep.subr.mxu0 0.0
    %389 = vmatpush1.msra.mxu0 %v360
    %390 = vmatprep.subr.mxu0 0.0
    %391 = vmatpush1.msra.mxu0 %v361
    %392 = vmatprep.subr.mxu0 0.0
    %393 = vmatpush1.msra.mxu0 %v362
    %394 = vmatprep.subr.mxu0 0.0
    %395 = vmatpush1.msra.mxu0 %v363
    %396 = vmatprep.subr.mxu0 0.0
    %397 = vmatpush1.msra.mxu0 %v364
    %398 = vmatprep.subr.mxu0 0.0
    %399 = vmatpush1.msra.mxu0 %v365
    %400 = vmatprep.subr.mxu0 0.0
    %401 = vmatpush1.msra.mxu0 %v366
    %402 = vmatprep.subr.mxu0 0.0
    %403 = vmatpush1.msra.mxu0 %v367
    %404 = vmatprep.subr.mxu0 0.0
    %405 = vmatpush1.msra.mxu0 0.0
    %406 = vmatprep.subr.mxu0 0.0
    %407 = vmatpush1.msra.mxu0 0.0
    %408 = vmatprep.subr.mxu0 0.0
    %409 = vmatpush1.msra.mxu0 0.0
    %410 = vmatprep.subr.mxu0 0.0
    %411 = vmatpush1.msra.mxu0 0.0
    %412 = vmatprep.subr.mxu0 0.0
    %413 = vmatpush1.msra.mxu0 0.0
    %414 = vmatprep.subr.mxu0 0.0
    %415 = vmatpush1.msra.mxu0 0.0
    %416 = vmatprep.subr.mxu0 0.0
    %417 = vmatpush1.msra.mxu0 0.0
    %418 = vmatprep.subr.mxu0 0.0
    %419 = vmatpush1.msra.mxu0 0.0
    %420 = vmatprep.subr.mxu0 0.0
    %421 = vmatpush1.msra.mxu0 0.0
    %422 = vmatprep.subr.mxu0 0.0
    %423 = vmatpush1.msra.mxu0 0.0
    %424 = vmatprep.subr.mxu0 0.0
    %425 = vmatpush1.msra.mxu0 0.0
    %426 = vmatprep.subr.mxu0 0.0
    %427 = vmatpush1.msra.mxu0 0.0
    %428 = vmatprep.subr.mxu0 0.0
    %429 = vmatpush1.msra.mxu0 0.0
    %430 = vmatprep.subr.mxu0 0.0
    %431 = vmatpush1.msra.mxu0 0.0
    %432 = vmatprep.subr.mxu0 0.0
    %433 = vmatpush1.msra.mxu0 0.0
    %434 = vmatprep.subr.mxu0 0.0
    %435 = vmatpush1.msra.mxu0 0.0
    %436 = vmatprep.mubr.f32.mxu0 0.0
    %437 = vmatmul.mubr.f32.gmra.mrb[0].mxu0 %v350
    %v438 = vpop.f32.mrb[0].mxu0
    %v439 = vadd.f32 %v371, %v438
    %v440 = vpop.f32.mrb[0].mxu0
    %441 = vdwg.mxu0
    %vm442 = vcmask 15360
    %443 = vst.msk [vmem:[%s5] sm:$0xff] %vm442, %v439
    // Predicated region
    $region26: #{tpu_custom_call.1} parent=1 // pred_check
      _
    $region27: #{tpu_custom_call.1} parent=1 // pred_check_branch
      %445 = sbr.rel (0) target = $region29
    $region28: #{tpu_custom_call.1} parent=1 // pred_region
      _
    $region29: #{tpu_custom_call.1} parent=1 // pred_fallthru
      _
    // Predicated region
    $region30: #{tpu_custom_call.1} parent=1 // pred_check
      _
    $region31: #{tpu_custom_call.1} parent=1 // pred_check_branch
      %447 = sbr.rel (0) target = $region33
    $region32: #{tpu_custom_call.1} parent=1 // pred_region
      _
    $region33: #{tpu_custom_call.1} parent=1 // pred_fallthru
      _
    %448 = vsyncpa [#allocation3], 1

</llo_original>
